<compile_context>
chip_gen: v5e
topology: v5e:2x2
jax: 0.10.0
libtpu: 0.0.40
codegen_flags: <defaults>
</compile_context>

<pallas_src>
import functools

import jax
import jax.numpy as jnp
from jax.experimental import pallas as pl
from jax.experimental.pallas import tpu as pltpu

_LANE = 128


def _round_up(x, m):
    return (x + m - 1) // m * m


def _mlp_kernel(n_inputs, n_layers, *refs):
    """Fused MLP chain on VMEM tiles.

    refs = (x_0 .. x_{n_inputs-1},
            W0_0 .. W0_{n_inputs-1}, b0,      # layer 0: one weight per input
            W1, b1, ..., W_{L-1}, b_{L-1},
            out)

    Layer 0 sums one MXU matmul per input; every layer applies bias + tanh in
    f32.  Weights may be bf16: activations are cast to the weight dtype right
    before the dot and accumulated in f32 via preferred_element_type.  The
    Python layer loop unrolls at trace time.
    """
    x_refs = refs[:n_inputs]
    out_ref = refs[-1]
    params = refs[n_inputs:-1]

    acc = None
    for i in range(n_inputs):
        w = params[i][...]
        t = jnp.dot(x_refs[i][...].astype(w.dtype), w,
                    preferred_element_type=jnp.float32)
        acc = t if acc is None else acc + t
    h = jnp.tanh(acc + params[n_inputs][...])          # bias (1, P) broadcasts

    idx = n_inputs + 1
    for _ in range(1, n_layers):
        w = params[idx][...]
        b = params[idx + 1][...]
        idx += 2
        h = jnp.tanh(jnp.dot(h.astype(w.dtype), w,
                             preferred_element_type=jnp.float32) + b)

    out_ref[...] = h.astype(out_ref.dtype)


def _pick_batch_tile(batch):
    """Batch tile: large tiles amortize the ~0.35us/grid-step overhead, but
    keep >= 2 steps once batch >= 512 so the "parallel" axis can use both
    TensorCores on v7x.  Capped at 1024 rows (~0.5 MiB/buffer at 128 f32
    lanes) so double-buffered in/out tiles sit far under v5e's 16 MiB scoped
    VMEM default."""
    if batch < 512:
        return batch                       # single tile; block == full dim
    return min(_round_up(pl.cdiv(batch, 2), 8), 1024)


def _run_mlp(xs, params, n_layers, out_dim, out_dtype):
    """Run a fused MLP chain.  xs: list of (B, d_i) inputs sharing batch B.
    params: flat kernel params (len(xs) layer-0 weights, layer-0 bias, then
    (W, b) per later layer).  Returns (B, out_dim)."""
    batch = xs[0].shape[0]
    tile = _pick_batch_tile(batch)
    grid = (pl.cdiv(batch, tile),)         # ragged last block is masked

    in_specs = []
    args = []
    for x in xs:
        d = x.shape[1]
        in_specs.append(pl.BlockSpec((tile, d), lambda i: (i, 0)))
        args.append(x)
    for p in params:
        # Constant index_map -> fetched once, VMEM-resident across the grid.
        in_specs.append(pl.BlockSpec(p.shape, lambda i: (0, 0)))
        args.append(p)

    kernel = functools.partial(_mlp_kernel, len(xs), n_layers)
    return pl.pallas_call(
        kernel,
        out_shape=jax.ShapeDtypeStruct((batch, out_dim), out_dtype),
        grid=grid,
        in_specs=in_specs,
        out_specs=pl.BlockSpec((tile, out_dim), lambda i: (i, 0)),
        compiler_params=pltpu.CompilerParams(
            dimension_semantics=("parallel",)),
    )(*args)


class NonSharedMLPExtractorPallas:
    """JAX/Pallas port of NonSharedMLPExtractor (activation = Tanh)."""

    def __init__(self, features_dim, net_arch, key, use_bf16=True):
        if isinstance(net_arch, dict):
            pi_layers_dims = list(net_arch.get("pi", []))
            vf_layers_dims = list(net_arch.get("vf", []))
        else:
            pi_layers_dims = vf_layers_dims = list(net_arch)

        self.in_dim_pi = features_dim["pi"]
        self.in_dim_vf = features_dim["vf"]
        self.latent_dim_pi = pi_layers_dims[-1] if pi_layers_dims else self.in_dim_pi
        self.latent_dim_vf = vf_layers_dims[-1] if vf_layers_dims else self.in_dim_vf
        self._w_dtype = jnp.bfloat16 if use_bf16 else jnp.float32

        def init_net(last_dim, layer_dims, key):
            ws, bs = [], []
            for d in layer_dims:
                key, kw, kb = jax.random.split(key, 3)
                bound = 1.0 / jnp.sqrt(jnp.float32(last_dim))
                ws.append(jax.random.uniform(kw, (last_dim, d), jnp.float32,
                                             -bound, bound))
                bs.append(jax.random.uniform(kb, (1, d), jnp.float32,
                                             -bound, bound))
                last_dim = d
            return ws, bs, key

        # Raw f32 parameters (reference / export).
        self.pi_ws, self.pi_bs, key = init_net(self.in_dim_pi, pi_layers_dims, key)
        self.vf_ws, self.vf_bs, key = init_net(self.in_dim_vf, vf_layers_dims, key)

        # Per-net lane-padded chains (forward_actor / forward_critic and the
        # fallback when the fused packing does not apply).
        self._pi_chain = self._build_single_chain(self.in_dim_pi, self.pi_ws, self.pi_bs)
        self._vf_chain = self._build_single_chain(self.in_dim_vf, self.vf_ws, self.vf_bs)

        # Fused block-diagonal chain: pi + vf as one matmul chain per layer.
        self._fused_chain = None
        if self.pi_ws and self.vf_ws and len(self.pi_ws) == len(self.vf_ws):
            self._fused_chain = self._build_fused_chain()
        # TODO(synk): if pi/vf layer counts differ, forward() falls back to two
        # per-net pallas_calls instead of the single fused kernel.

    def _build_single_chain(self, in_dim, ws, bs):
        if not ws:
            return None
        dims = [in_dim] + [w.shape[1] for w in ws]
        # Only output lanes are padded; layer-0 input rows stay raw so the
        # caller's features feed the kernel without a padded copy.
        padded = [in_dim] + [_round_up(d, _LANE) for d in dims[1:]]
        params = []
        for l, (w, b) in enumerate(zip(ws, bs)):
            W = jnp.zeros((padded[l], padded[l + 1]), jnp.float32)
            W = W.at[:dims[l], :dims[l + 1]].set(w)
            B = jnp.zeros((1, padded[l + 1]), jnp.float32)
            B = B.at[:, :dims[l + 1]].set(b)
            params.append(W.astype(self._w_dtype))
            params.append(B)                 # bias stays f32 (f32 add + tanh)
        return {"params": params, "n_layers": len(ws),
                "out_pad": padded[-1], "out_dim": dims[-1]}

    def _build_fused_chain(self):
        dp = [self.in_dim_pi] + [w.shape[1] for w in self.pi_ws]
        dv = [self.in_dim_vf] + [w.shape[1] for w in self.vf_ws]
        L = len(self.pi_ws)
        P = [None] + [_round_up(dp[l] + dv[l], _LANE) for l in range(1, L + 1)]

        params = []
        # Layer 0: split row-wise so pi/vf features are passed directly.
        W0p = jnp.zeros((dp[0], P[1]), jnp.float32).at[:, :dp[1]].set(self.pi_ws[0])
        W0v = jnp.zeros((dv[0], P[1]), jnp.float32)
        W0v = W0v.at[:, dp[1]:dp[1] + dv[1]].set(self.vf_ws[0])
        b0 = jnp.zeros((1, P[1]), jnp.float32)
        b0 = b0.at[:, :dp[1]].set(self.pi_bs[0])
        b0 = b0.at[:, dp[1]:dp[1] + dv[1]].set(self.vf_bs[0])
        params += [W0p.astype(self._w_dtype), W0v.astype(self._w_dtype), b0]

        # Layers 1..L-1: block-diagonal (pi lanes [0:dp], vf lanes [dp:dp+dv]).
        for l in range(1, L):
            W = jnp.zeros((P[l], P[l + 1]), jnp.float32)
            W = W.at[:dp[l], :dp[l + 1]].set(self.pi_ws[l])
            W = W.at[dp[l]:dp[l] + dv[l],
                     dp[l + 1]:dp[l + 1] + dv[l + 1]].set(self.vf_ws[l])
            b = jnp.zeros((1, P[l + 1]), jnp.float32)
            b = b.at[:, :dp[l + 1]].set(self.pi_bs[l])
            b = b.at[:, dp[l + 1]:dp[l + 1] + dv[l + 1]].set(self.vf_bs[l])
            params += [W.astype(self._w_dtype), b]

        return {"params": params, "n_layers": L, "out_pad": P[L],
                "pi_out": dp[L], "vf_out": dv[L]}

    # --------------------------- public API ---------------------------------

    def forward(self, pi_features, vf_features):
        assert pi_features.shape[0] == vf_features.shape[0], (
            "pi_features and vf_features must share a batch dimension")
        if self._fused_chain is None:
            return (self.forward_actor(pi_features),
                    self.forward_critic(vf_features))
        c = self._fused_chain
        out = _run_mlp([pi_features, vf_features], c["params"], c["n_layers"],
                       c["out_pad"], pi_features.dtype)
        # TODO(synk): if the downstream policy/value heads are fused too, consume
        # the packed (B, out_pad) slab directly instead of slicing here.
        latent_pi = out[:, :c["pi_out"]]
        latent_vf = out[:, c["pi_out"]:c["pi_out"] + c["vf_out"]]
        return latent_pi, latent_vf

    def forward_actor(self, features):
        return self._forward_single(features, self._pi_chain)

    def forward_critic(self, features):
        return self._forward_single(features, self._vf_chain)

    @staticmethod
    def _forward_single(features, chain):
        if chain is None:        # empty net_arch -> identity (empty nn.Sequential)
            return features
        out = _run_mlp([features], chain["params"], chain["n_layers"],
                       chain["out_pad"], features.dtype)
        return out[:, :chain["out_dim"]]


if __name__ == "__main__":
    key = jax.random.PRNGKey(0)

    # Small shapes consistent with the module: batch=8, feature dims 32,
    # net_arch = {'pi': [64, 64], 'vf': [64, 32]}, activation = Tanh.
    features_dim = {"pi": 32, "vf": 32}
    net_arch = {"pi": [64, 64], "vf": [64, 32]}

    key, k_model, k_pi, k_vf = jax.random.split(key, 4)
    pi_features = jax.random.normal(k_pi, (8, features_dim["pi"]), jnp.float32)
    vf_features = jax.random.normal(k_vf, (8, features_dim["vf"]), jnp.float32)

    def ref_mlp(x, ws, bs):
        h = x
        for w, b in zip(ws, bs):
            h = jnp.tanh(h @ w + b)
        return h

    # ---- f32 model: exact-precision check of the packing / kernel wiring ----
    model_f32 = NonSharedMLPExtractorPallas(features_dim, net_arch, k_model,
                                            use_bf16=False)
    lp, lv = model_f32.forward(pi_features, vf_features)
    jax.block_until_ready((lp, lv))
    ref_pi = ref_mlp(pi_features, model_f32.pi_ws, model_f32.pi_bs)
    ref_vf = ref_mlp(vf_features, model_f32.vf_ws, model_f32.vf_bs)
    assert lp.shape == (8, model_f32.latent_dim_pi)
    assert lv.shape == (8, model_f32.latent_dim_vf)
    assert jnp.allclose(lp, ref_pi, atol=1e-5), "f32 policy mismatch"
    assert jnp.allclose(lv, ref_vf, atol=1e-5), "f32 value mismatch"
    a = model_f32.forward_actor(pi_features)
    c = model_f32.forward_critic(vf_features)
    jax.block_until_ready((a, c))
    assert jnp.allclose(a, ref_pi, atol=1e-5), "f32 actor path mismatch"
    assert jnp.allclose(c, ref_vf, atol=1e-5), "f32 critic path mismatch"

    # ---- bf16-MXU model (default): relaxed tolerance vs f32 reference -------
    model = NonSharedMLPExtractorPallas(features_dim, net_arch, k_model,
                                        use_bf16=True)
    lp16, lv16 = model.forward(pi_features, vf_features)
    jax.block_until_ready((lp16, lv16))
    assert jnp.allclose(lp16, ref_pi, atol=3e-2), "bf16 policy mismatch"
    assert jnp.allclose(lv16, ref_vf, atol=3e-2), "bf16 value mismatch"

    # ---- multi-tile / ragged-batch path (grid > 1, masked last block) -------
    key, k_pi2, k_vf2 = jax.random.split(key, 3)
    big_pi = jax.random.normal(k_pi2, (600, features_dim["pi"]), jnp.float32)
    big_vf = jax.random.normal(k_vf2, (600, features_dim["vf"]), jnp.float32)
    blp, blv = model.forward(big_pi, big_vf)
    jax.block_until_ready((blp, blv))
    assert blp.shape == (600, model.latent_dim_pi)
    assert blv.shape == (600, model.latent_dim_vf)
    assert jnp.allclose(blp, ref_mlp(big_pi, model.pi_ws, model.pi_bs),
                        atol=3e-2), "ragged-batch policy mismatch"
    assert jnp.allclose(blv, ref_mlp(big_vf, model.vf_ws, model.vf_bs),
                        atol=3e-2), "ragged-batch value mismatch"

    print("KERNEL_OK")
</pallas_src>

<mosaic_0001>
module attributes {stable_mosaic.version = 11 : i64} {
  func.func @_mlp_kernel(%arg0: i32, %arg1: memref<8x32xf32, #tpu.memory_space<vmem>>, %arg2: memref<8x32xf32, #tpu.memory_space<vmem>>, %arg3: memref<32x128xf32, #tpu.memory_space<vmem>>, %arg4: memref<32x128xf32, #tpu.memory_space<vmem>>, %arg5: memref<1x128xf32, #tpu.memory_space<vmem>>, %arg6: memref<128x128xf32, #tpu.memory_space<vmem>>, %arg7: memref<1x128xf32, #tpu.memory_space<vmem>>, %arg8: memref<8x128xf32, #tpu.memory_space<vmem>>) attributes {dimension_semantics = [#tpu.dimension_semantics<parallel>], iteration_bounds = array<i64: 1>, scalar_prefetch = 0 : i64, scratch_operands = 0 : i64, tpu.core_type = #tpu.core_type<tc>, window_params = [{transform_indices = @transform_0, window_bounds = array<i64: 8, 32>}, {transform_indices = @transform_1, window_bounds = array<i64: 8, 32>}, {pipeline_mode = #tpu.pipeline_mode<synchronous>, transform_indices = @transform_2, window_bounds = array<i64: 32, 128>}, {pipeline_mode = #tpu.pipeline_mode<synchronous>, transform_indices = @transform_3, window_bounds = array<i64: 32, 128>}, {pipeline_mode = #tpu.pipeline_mode<synchronous>, transform_indices = @transform_4, window_bounds = array<i64: 1, 128>}, {pipeline_mode = #tpu.pipeline_mode<synchronous>, transform_indices = @transform_5, window_bounds = array<i64: 128, 128>}, {pipeline_mode = #tpu.pipeline_mode<synchronous>, transform_indices = @transform_6, window_bounds = array<i64: 1, 128>}, {transform_indices = @transform_7, window_bounds = array<i64: 8, 128>}]} {
    %c0 = arith.constant 0 : index
    %c0_0 = arith.constant 0 : index
    %0 = vector.load %arg3[%c0, %c0_0] : memref<32x128xf32, #tpu.memory_space<vmem>>, vector<32x128xf32>
    %c0_1 = arith.constant 0 : index
    %c0_2 = arith.constant 0 : index
    %1 = vector.load %arg1[%c0_1, %c0_2] : memref<8x32xf32, #tpu.memory_space<vmem>>, vector<8x32xf32>
    %cst = arith.constant dense<0.000000e+00> : vector<8x128xf32>
    %2 = tpu.matmul %1, %0, %cst {dimension_numbers = #tpu.dot_dimension_numbers<[1], [0], [0], [1], [0, 0, 1, 1], [], []>} : vector<8x32xf32>, vector<32x128xf32>, vector<8x128xf32> -> vector<8x128xf32>
    %c0_3 = arith.constant 0 : index
    %c0_4 = arith.constant 0 : index
    %3 = vector.load %arg4[%c0_3, %c0_4] : memref<32x128xf32, #tpu.memory_space<vmem>>, vector<32x128xf32>
    %c0_5 = arith.constant 0 : index
    %c0_6 = arith.constant 0 : index
    %4 = vector.load %arg2[%c0_5, %c0_6] : memref<8x32xf32, #tpu.memory_space<vmem>>, vector<8x32xf32>
    %cst_7 = arith.constant dense<0.000000e+00> : vector<8x128xf32>
    %5 = tpu.matmul %4, %3, %cst_7 {dimension_numbers = #tpu.dot_dimension_numbers<[1], [0], [0], [1], [0, 0, 1, 1], [], []>} : vector<8x32xf32>, vector<32x128xf32>, vector<8x128xf32> -> vector<8x128xf32>
    %6 = arith.addf %2, %5 : vector<8x128xf32>
    %c0_8 = arith.constant 0 : index
    %c0_9 = arith.constant 0 : index
    %7 = vector.load %arg5[%c0_8, %c0_9] : memref<1x128xf32, #tpu.memory_space<vmem>>, vector<1x128xf32>
    %8 = vector.broadcast %7 : vector<1x128xf32> to vector<8x128xf32>
    %9 = arith.addf %6, %8 : vector<8x128xf32>
    %10 = math.tanh %9 : vector<8x128xf32>
    %c0_10 = arith.constant 0 : index
    %c0_11 = arith.constant 0 : index
    %11 = vector.load %arg6[%c0_10, %c0_11] : memref<128x128xf32, #tpu.memory_space<vmem>>, vector<128x128xf32>
    %c0_12 = arith.constant 0 : index
    %c0_13 = arith.constant 0 : index
    %12 = vector.load %arg7[%c0_12, %c0_13] : memref<1x128xf32, #tpu.memory_space<vmem>>, vector<1x128xf32>
    %cst_14 = arith.constant dense<0.000000e+00> : vector<8x128xf32>
    %13 = tpu.matmul %10, %11, %cst_14 {dimension_numbers = #tpu.dot_dimension_numbers<[1], [0], [0], [1], [0, 0, 1, 1], [], []>} : vector<8x128xf32>, vector<128x128xf32>, vector<8x128xf32> -> vector<8x128xf32>
    %14 = vector.broadcast %12 : vector<1x128xf32> to vector<8x128xf32>
    %15 = arith.addf %13, %14 : vector<8x128xf32>
    %16 = math.tanh %15 : vector<8x128xf32>
    %c0_15 = arith.constant 0 : index
    %c0_16 = arith.constant 0 : index
    %17 = vector.load %arg8[%c0_15, %c0_16] : memref<8x128xf32, #tpu.memory_space<vmem>>, vector<8x128xf32>
    tpu.vector_store %arg8[%c0_15, %c0_16], %16 {strides = array<i32>} : memref<8x128xf32, #tpu.memory_space<vmem>>, vector<8x128xf32>,
    return
  }
  func.func @transform_0(%arg0: i32) -> (i32, i32) {
    %c0_i32 = arith.constant 0 : i32
    %c0_i32_0 = arith.constant 0 : i32
    return %arg0, %c0_i32 : i32, i32
  }
  func.func @transform_1(%arg0: i32) -> (i32, i32) {
    %c0_i32 = arith.constant 0 : i32
    %c0_i32_0 = arith.constant 0 : i32
    return %arg0, %c0_i32 : i32, i32
  }
  func.func @transform_2(%arg0: i32) -> (i32, i32) {
    %c0_i32 = arith.constant 0 : i32
    %c0_i32_0 = arith.constant 0 : i32
    %c0_i32_1 = arith.constant 0 : i32
    return %c0_i32, %c0_i32_0 : i32, i32
  }
  func.func @transform_3(%arg0: i32) -> (i32, i32) {
    %c0_i32 = arith.constant 0 : i32
    %c0_i32_0 = arith.constant 0 : i32
    %c0_i32_1 = arith.constant 0 : i32
    return %c0_i32, %c0_i32_0 : i32, i32
  }
  func.func @transform_4(%arg0: i32) -> (i32, i32) {
    %c0_i32 = arith.constant 0 : i32
    %c0_i32_0 = arith.constant 0 : i32
    %c0_i32_1 = arith.constant 0 : i32
    return %c0_i32, %c0_i32_0 : i32, i32
  }
  func.func @transform_5(%arg0: i32) -> (i32, i32) {
    %c0_i32 = arith.constant 0 : i32
    %c0_i32_0 = arith.constant 0 : i32
    %c0_i32_1 = arith.constant 0 : i32
    return %c0_i32, %c0_i32_0 : i32, i32
  }
  func.func @transform_6(%arg0: i32) -> (i32, i32) {
    %c0_i32 = arith.constant 0 : i32
    %c0_i32_0 = arith.constant 0 : i32
    %c0_i32_1 = arith.constant 0 : i32
    return %c0_i32, %c0_i32_0 : i32, i32
  }
  func.func @transform_7(%arg0: i32) -> (i32, i32) {
    %c0_i32 = arith.constant 0 : i32
    %c0_i32_0 = arith.constant 0 : i32
    return %arg0, %c0_i32 : i32, i32
  }
}

</mosaic_0001>

<llo_original>
// kernel: tpu_custom_call.1
$region0: #{tpu_custom_call.1}
  #allocation0 [shape = 'u32[]', space=smem, size = 0x4, offset = 0x4, fixed_abs, tag = 'smem constant byte address 0x4 - core index']
  #allocation1 [shape = 'u32[72,128]{1,0:T(1,128)}', space=vmem, size = 0x9000, scoped, tag = 'internal scratch']
  %s0 = inlined_call_operand.hbm [shape: f32[8,32], index: 0, kind: input, shape index: {}]
  %s1 = inlined_call_operand.hbm [shape: f32[8,32], index: 1, kind: input, shape index: {}]
  %s2 = inlined_call_operand.hbm [shape: f32[32,128], index: 2, kind: input, shape index: {}]
  %s3 = inlined_call_operand.hbm [shape: f32[32,128], index: 3, kind: input, shape index: {}]
  %s4 = inlined_call_operand.vmem [shape: f32[1,128], index: 4, kind: input, shape index: {}]
  %s5 = inlined_call_operand.hbm [shape: f32[128,128], index: 5, kind: input, shape index: {}]
  %s6 = inlined_call_operand.vmem [shape: f32[1,128], index: 6, kind: input, shape index: {}]
  %s7 = inlined_call_operand.hbm [shape: f32[8,128], index: 7, kind: output, shape index: {}]
  %s8 = sld [smem:[#allocation0]]
  $region58: #{tpu_custom_call.1} parent=0
    _
  %s10 = ssub.s32 1, %s8
  %s11 = scalar_select 0, %s10, %s8
  $region1: #{tpu_custom_call.1} parent=0
    #allocation2 [shape = 'u8[4096]{0}', space=vmem, size = 0x1000, scoped, tag = 'input window, operand 0, single buffered']
    #allocation3 [shape = 's32[1]{0}', space=sflag, size = 0x4, scoped, tag = 'scoped memory for tpu_custom_call.1']
    #allocation4 [shape = 's32[1]{0}', space=sflag, size = 0x4, scoped, tag = 'scoped memory for tpu_custom_call.1']
    #allocation5 [shape = 'u8[4096]{0}', space=vmem, size = 0x1000, scoped, tag = 'input window, operand 1, single buffered']
    #allocation6 [shape = 's32[1]{0}', space=sflag, size = 0x4, scoped, tag = 'scoped memory for tpu_custom_call.1']
    #allocation7 [shape = 'u8[16384]{0}', space=vmem, size = 0x4000, scoped, tag = 'input window, operand 2, single buffered']
    #allocation8 [shape = 'u8[16384]{0}', space=vmem, size = 0x4000, scoped, tag = 'input window, operand 3, single buffered']
    #allocation9 [shape = 's32[1]{0}', space=sflag, size = 0x4, scoped, tag = 'scoped memory for tpu_custom_call.1']
    #allocation10 [shape = 'u8[65536]{0}', space=vmem, size = 0x10000, scoped, tag = 'input window, operand 5, single buffered']
    #allocation11 [shape = 'u8[4096]{0}', space=vmem, size = 0x1000, scoped, tag = 'output window, operand 0, single buffered']
    %12 = vsyncpa [#allocation3], 0
    %13 = vsyncpa [#allocation6], 0
    %14 = vsyncpa [#allocation9], 0
    %15 = vsyncpa [#allocation4], 0
    // Predicated region
    $region2: #{tpu_custom_call.1} parent=1 // pred_check
      _
    $region3: #{tpu_custom_call.1} parent=1 // pred_check_branch
      %17 = sbr.rel (0) target = $region5
    $region4: #{tpu_custom_call.1} parent=1 // pred_region
      %19 = vsyncadd [#allocation3], 0
      %s21 = sshll.u32 %s0, 4
      %s22 = int_to_ptr.hbm [resolvable:$true] %s21
      %s23 = sshll.u32 [#allocation2], 4
      %s24 = int_to_ptr.vmem [resolvable:$true] %s23
      %26 = dma.hbm_to_vmem [thread:$0]  %s22, 128, %s24, [#allocation3]
    $region5: #{tpu_custom_call.1} parent=1 // pred_fallthru
      _
    // Predicated region
    $region6: #{tpu_custom_call.1} parent=1 // pred_check
      _
    $region7: #{tpu_custom_call.1} parent=1 // pred_check_branch
      %28 = sbr.rel (0) target = $region9
    $region8: #{tpu_custom_call.1} parent=1 // pred_region
      %30 = vsyncadd [#allocation6], 0
      %s32 = sshll.u32 %s1, 4
      %s33 = int_to_ptr.hbm [resolvable:$true] %s32
      %s34 = sshll.u32 [#allocation5], 4
      %s35 = int_to_ptr.vmem [resolvable:$true] %s34
      %37 = dma.hbm_to_vmem [thread:$0]  %s33, 128, %s35, [#allocation6]
    $region9: #{tpu_custom_call.1} parent=1 // pred_fallthru
      _
    // Predicated region
    $region10: #{tpu_custom_call.1} parent=1 // pred_check
      _
    $region11: #{tpu_custom_call.1} parent=1 // pred_check_branch
      %39 = sbr.rel (0) target = $region13
    $region12: #{tpu_custom_call.1} parent=1 // pred_region
      %41 = vsyncadd [#allocation6], 0
      %s42 = sshll.u32 %s2, 4
      %s43 = int_to_ptr.hbm [resolvable:$true] %s42
      %s44 = sshll.u32 [#allocation7], 4
      %s45 = int_to_ptr.vmem [resolvable:$true] %s44
      %50 = dma.hbm_to_vmem [thread:$0]  %s43, 512, %s45, [#allocation6], 128, 128, 8
    $region13: #{tpu_custom_call.1} parent=1 // pred_fallthru
      _
    // Predicated region
    $region14: #{tpu_custom_call.1} parent=1 // pred_check
      _
    $region15: #{tpu_custom_call.1} parent=1 // pred_check_branch
      %52 = sbr.rel (0) target = $region17
    $region16: #{tpu_custom_call.1} parent=1 // pred_region
      %54 = vsyncadd [#allocation9], 0
      %s55 = sshll.u32 %s3, 4
      %s56 = int_to_ptr.hbm [resolvable:$true] %s55
      %s57 = sshll.u32 [#allocation8], 4
      %s58 = int_to_ptr.vmem [resolvable:$true] %s57
      %63 = dma.hbm_to_vmem [thread:$0]  %s56, 512, %s58, [#allocation9], 128, 128, 8
    $region17: #{tpu_custom_call.1} parent=1 // pred_fallthru
      _
    // Predicated region
    $region18: #{tpu_custom_call.1} parent=1 // pred_check
      _
    $region19: #{tpu_custom_call.1} parent=1 // pred_check_branch
      %65 = sbr.rel (0) target = $region21
    $region20: #{tpu_custom_call.1} parent=1 // pred_region
      _
    $region21: #{tpu_custom_call.1} parent=1 // pred_fallthru
      _
    // Predicated region
    $region22: #{tpu_custom_call.1} parent=1 // pred_check
      _
    $region23: #{tpu_custom_call.1} parent=1 // pred_check_branch
      %67 = sbr.rel (0) target = $region25
    $region24: #{tpu_custom_call.1} parent=1 // pred_region
      %69 = vsyncadd [#allocation9], 0
      %s70 = sshll.u32 %s5, 4
      %s71 = int_to_ptr.hbm [resolvable:$true] %s70
      %s72 = sshll.u32 [#allocation10], 4
      %s73 = int_to_ptr.vmem [resolvable:$true] %s72
      %78 = dma.hbm_to_vmem [thread:$0]  %s71, 2048, %s73, [#allocation9], 128, 128, 8
    $region25: #{tpu_custom_call.1} parent=1 // pred_fallthru
      _
    // Predicated region
    $region26: #{tpu_custom_call.1} parent=1 // pred_check
      _
    $region27: #{tpu_custom_call.1} parent=1 // pred_check_branch
      %80 = sbr.rel (0) target = $region29
    $region28: #{tpu_custom_call.1} parent=1 // pred_region
      _
    $region29: #{tpu_custom_call.1} parent=1 // pred_fallthru
      _
    // Predicated region
    $region30: #{tpu_custom_call.1} parent=1 // pred_check
      _
    $region31: #{tpu_custom_call.1} parent=1 // pred_check_branch
      %82 = sbr.rel (0) target = $region33
    $region32: #{tpu_custom_call.1} parent=1 // pred_region
      %84 = dma.done [#allocation3], 128
    $region33: #{tpu_custom_call.1} parent=1 // pred_fallthru
      _
    // Predicated region
    $region34: #{tpu_custom_call.1} parent=1 // pred_check
      _
    $region35: #{tpu_custom_call.1} parent=1 // pred_check_branch
      %86 = sbr.rel (0) target = $region37
    $region36: #{tpu_custom_call.1} parent=1 // pred_region
      %88 = dma.done [#allocation6], 128
    $region37: #{tpu_custom_call.1} parent=1 // pred_fallthru
      _
    // Predicated region
    $region38: #{tpu_custom_call.1} parent=1 // pred_check
      _
    $region39: #{tpu_custom_call.1} parent=1 // pred_check_branch
      %90 = sbr.rel (0) target = $region41
    $region40: #{tpu_custom_call.1} parent=1 // pred_region
      %92 = dma.done [#allocation6], 512
    $region41: #{tpu_custom_call.1} parent=1 // pred_fallthru
      _
    // Predicated region
    $region42: #{tpu_custom_call.1} parent=1 // pred_check
      _
    $region43: #{tpu_custom_call.1} parent=1 // pred_check_branch
      %94 = sbr.rel (0) target = $region45
    $region44: #{tpu_custom_call.1} parent=1 // pred_region
      %96 = dma.done [#allocation9], 512
    $region45: #{tpu_custom_call.1} parent=1 // pred_fallthru
      _
    // Predicated region
    $region46: #{tpu_custom_call.1} parent=1 // pred_check
      _
    $region47: #{tpu_custom_call.1} parent=1 // pred_check_branch
      %98 = sbr.rel (0) target = $region49
    $region48: #{tpu_custom_call.1} parent=1 // pred_region
      %100 = dma.done [#allocation9], 2048
    $region49: #{tpu_custom_call.1} parent=1 // pred_fallthru
      _
    %v101 = vld [vmem:[#allocation7] sm:$0xff]
    %v102 = vld [vmem:[#allocation7 + $0x8] sm:$0xff]
    %v103 = vld [vmem:[#allocation7 + $0x10] sm:$0xff]
    %v104 = vld [vmem:[#allocation7 + $0x18] sm:$0xff]
    %v105 = vld [vmem:[#allocation2] sm:$0xff]
    %v106 = vld [vmem:[#allocation8] sm:$0xff]
    %v107 = vld [vmem:[#allocation8 + $0x8] sm:$0xff]
    %v108 = vld [vmem:[#allocation8 + $0x10] sm:$0xff]
    %v109 = vld [vmem:[#allocation8 + $0x18] sm:$0xff]
    %v110 = vld [vmem:[#allocation5] sm:$0xff]
    %vm111 = vcmask 261120
    %v113 = vsel %vm111, %v110, 0
    %115 = vmatpush.msra.mxu0 0.0
    %116 = vmatpush.msra.mxu0 0.0
    %117 = vmatpush.msra.mxu0 0.0
    %118 = vmatpush.msra.mxu0 0.0
    %119 = vmatpush.msra.mxu0 0.0
    %120 = vmatpush.msra.mxu0 0.0
    %121 = vmatpush.msra.mxu0 0.0
    %122 = vmatpush.msra.mxu0 0.0
    %123 = vmatpush.msra.mxu0 0.0
    %124 = vmatpush.msra.mxu0 0.0
    %125 = vmatpush.msra.mxu0 0.0
    %126 = vmatpush.msra.mxu0 0.0
    %127 = vmatpush.msra.mxu0 %v109
    %128 = vmatpush.msra.mxu0 %v108
    %129 = vmatpush.msra.mxu0 %v107
    %130 = vmatpush.msra.mxu0 %v106
    %131 = vmatmul.f32.gmra.mxu0 %v113
    %v132 = vpop.f32.mrf.mxu0
    %v133 = vadd.f32 0.0, %v132
    %134 = vdwg.mxu0
    %v136 = vsel %vm111, %v105, 0
    %138 = vmatpush.msra.mxu0 0.0
    %139 = vmatpush.msra.mxu0 0.0
    %140 = vmatpush.msra.mxu0 0.0
    %141 = vmatpush.msra.mxu0 0.0
    %142 = vmatpush.msra.mxu0 0.0
    %143 = vmatpush.msra.mxu0 0.0
    %144 = vmatpush.msra.mxu0 0.0
    %145 = vmatpush.msra.mxu0 0.0
    %146 = vmatpush.msra.mxu0 0.0
    %147 = vmatpush.msra.mxu0 0.0
    %148 = vmatpush.msra.mxu0 0.0
    %149 = vmatpush.msra.mxu0 0.0
    %150 = vmatpush.msra.mxu0 %v104
    %151 = vmatpush.msra.mxu0 %v103
    %152 = vmatpush.msra.mxu0 %v102
    %153 = vmatpush.msra.mxu0 %v101
    %154 = vmatmul.f32.gmra.mxu0 %v136
    %v155 = vpop.f32.mrf.mxu0
    %v156 = vadd.f32 %v133, %v155
    %157 = vdwg.mxu0
    %v158 = vld [vmem:[%s4] sm:$0x1]
    %v160 = vperm.slane %v158, 0
    %v162 = vadd.f32 %v156, %v160
    %v163 = vtanh.pop %v162
    %v164 = vld [vmem:[#allocation10] sm:$0xff]
    %v165 = vld [vmem:[#allocation10 + $0x8] sm:$0xff]
    %v166 = vld [vmem:[#allocation10 + $0x10] sm:$0xff]
    %v167 = vld [vmem:[#allocation10 + $0x18] sm:$0xff]
    %v168 = vld [vmem:[#allocation10 + $0x20] sm:$0xff]
    %v169 = vld [vmem:[#allocation10 + $0x28] sm:$0xff]
    %v170 = vld [vmem:[#allocation10 + $0x30] sm:$0xff]
    %v171 = vld [vmem:[#allocation10 + $0x38] sm:$0xff]
    %v172 = vld [vmem:[#allocation10 + $0x40] sm:$0xff]
    %v173 = vld [vmem:[#allocation10 + $0x48] sm:$0xff]
    %v174 = vld [vmem:[#allocation10 + $0x50] sm:$0xff]
    %v175 = vld [vmem:[#allocation10 + $0x58] sm:$0xff]
    %v176 = vld [vmem:[#allocation10 + $0x60] sm:$0xff]
    %v177 = vld [vmem:[#allocation10 + $0x68] sm:$0xff]
    %v178 = vld [vmem:[#allocation10 + $0x70] sm:$0xff]
    %v179 = vld [vmem:[#allocation10 + $0x78] sm:$0xff]
    %v180 = vld [vmem:[%s6] sm:$0x1]
    %v182 = vperm.slane %v180, 0
    %184 = vmatpush.msra.mxu0 %v179
    %185 = vmatpush.msra.mxu0 %v178
    %186 = vmatpush.msra.mxu0 %v177
    %187 = vmatpush.msra.mxu0 %v176
    %188 = vmatpush.msra.mxu0 %v175
    %189 = vmatpush.msra.mxu0 %v174
    %190 = vmatpush.msra.mxu0 %v173
    %191 = vmatpush.msra.mxu0 %v172
    %192 = vmatpush.msra.mxu0 %v171
    %193 = vmatpush.msra.mxu0 %v170
    %194 = vmatpush.msra.mxu0 %v169
    %195 = vmatpush.msra.mxu0 %v168
    %196 = vmatpush.msra.mxu0 %v167
    %197 = vmatpush.msra.mxu0 %v166
    %198 = vmatpush.msra.mxu0 %v165
    %199 = vmatpush.msra.mxu0 %v164
    %200 = vmatmul.f32.gmra.mxu0 %v163
    %v201 = vpop.f32.mrf.mxu0
    %v202 = vadd.f32 %v182, %v201
    %203 = vdwg.mxu0
    %v204 = vtanh.pop %v202
    %205 = vst [vmem:[#allocation11] sm:$0xff] %v204
    // Predicated region
    $region50: #{tpu_custom_call.1} parent=1 // pred_check
      _
    $region51: #{tpu_custom_call.1} parent=1 // pred_check_branch
      %207 = sbr.rel (0) target = $region53
    $region52: #{tpu_custom_call.1} parent=1 // pred_region
      %209 = vsyncadd [#allocation4], 0
      %s211 = sshll.u32 [#allocation11], 4
      %s212 = int_to_ptr.vmem [resolvable:$true] %s211
      %s213 = sshll.u32 %s7, 4
      %s214 = int_to_ptr.hbm [resolvable:$true] %s213
      %216 = dma.vmem_to_hbm [thread:$0]  %s212, 128, %s214, [#allocation4]
    $region53: #{tpu_custom_call.1} parent=1 // pred_fallthru
      _
    // Predicated region
    $region54: #{tpu_custom_call.1} parent=1 // pred_check
      _
    $region55: #{tpu_custom_call.1} parent=1 // pred_check_branch
      %218 = sbr.rel (0) target = $region57
    $region56: #{tpu_custom_call.1} parent=1 // pred_region
      %220 = dma.done [#allocation4], 128
    $region57: #{tpu_custom_call.1} parent=1 // pred_fallthru
      _
    %221 = vsyncpa [#allocation3], 1
    %222 = vsyncpa [#allocation6], 1
    %223 = vsyncpa [#allocation9], 1
    %224 = vsyncpa [#allocation4], 1

</llo_original>
